<compile_context>
chip_gen: v6e
topology: v6e:2x2x1
jax: 0.10.0
libtpu: 0.0.40
codegen_flags: <defaults>
</compile_context>

<pallas_src>
import jax
import jax.numpy as jnp
from jax.experimental import pallas as pl
from jax.experimental.pallas import tpu as pltpu

_SUBLANE = 8
_LANES = 128
_TARGET_TILE_BYTES = 8 << 20          # ~8 MiB of x per grid step
_VMEM_LIMIT_BYTES = 32 * 1024 * 1024  # room for 2 x 8 MiB double-buffered x tiles


def _linear_kernel(x_ref, w_ref, b_ref, o_ref):
    # x_ref: (TILE_R, L) VMEM  -- lane-dense activation tile (contiguous HBM slab)
    # w_ref: (L, G)      VMEM  -- tiny weight block, resident across the grid
    # b_ref: (1,)        SMEM  -- scalar bias
    # o_ref: (TILE_R, G) VMEM  -- per-sample outputs (G samples per x-view row)
    acc = jnp.dot(x_ref[...], w_ref[...], preferred_element_type=jnp.float32)
    o_ref[...] = (acc + b_ref[0]).astype(o_ref.dtype)


def _round_up(x, m):
    return ((x + m - 1) // m) * m


def _choose_tile_rows(n_rows, row_vmem_bytes):
    """Rows of the x view per grid step.

    Big enough (~8 MiB) to amortize the ~0.35 us per-step pipeline overhead,
    a multiple of 8 (sublanes) so full tiles satisfy the (8, 128) rule, and
    small enough to leave >= 2 balanced "parallel" steps (both v7x TensorCores)
    when the batch is big enough to split.
    """
    tile = max(_SUBLANE,
               (_TARGET_TILE_BYTES // row_vmem_bytes) // _SUBLANE * _SUBLANE)
    half = _round_up(pl.cdiv(n_rows, 2), _SUBLANE)
    tile = min(tile, half)
    if tile >= n_rows:
        return n_rows                      # single full-array block (always legal)
    return tile


def liner_net_forward(x, weight, bias):
    """LinerNet forward.  x: (B, F), weight: (1, F), bias: (1,) -> (B, 1) f32."""
    if x.dtype not in (jnp.float32, jnp.bfloat16):
        x = x.astype(jnp.float32)
    B, F = x.shape
    w_flat = weight.reshape(F).astype(x.dtype)
    b_smem = bias.astype(jnp.float32).reshape(1)

    groups = _LANES // F if F <= _LANES else 0
    if groups >= 1 and _LANES % F == 0 and B % groups == 0:
        # Fast path: free (bitcast) view packing `groups` samples per 128-lane row.
        n_rows = B // groups
        x_view = x.reshape(n_rows, _LANES)
        # Block-diagonal weight:  W_bd[l, g] = w[l % F] * (l // F == g)
        eye = jnp.eye(groups, dtype=x.dtype)
        w_mat = (eye[:, None, :] * w_flat[None, :, None]).reshape(_LANES, groups)
    else:
        # Fallback for shapes that don't pack into 128 lanes.
        # TODO(synk): a huge n_feature (single block > VMEM) would need a
        # feature-axis reduction grid; not needed for this module's shapes.
        n_rows, groups = B, 1
        x_view = x
        w_mat = w_flat.reshape(F, 1)

    L = x_view.shape[1]
    row_vmem_bytes = _round_up(L, _LANES) * x_view.dtype.itemsize
    tile_r = _choose_tile_rows(n_rows, row_vmem_bytes)

    out = pl.pallas_call(
        _linear_kernel,
        out_shape=jax.ShapeDtypeStruct((n_rows, groups), jnp.float32),
        grid=(pl.cdiv(n_rows, tile_r),),
        in_specs=[
            pl.BlockSpec((tile_r, L), lambda i: (i, 0)),           # x tile
            pl.BlockSpec((L, groups), lambda i: (0, 0)),           # weight (resident)
            pl.BlockSpec(memory_space=pltpu.MemorySpace.SMEM),     # scalar bias
        ],
        out_specs=pl.BlockSpec((tile_r, groups), lambda i: (i, 0)),
        compiler_params=pltpu.CompilerParams(
            dimension_semantics=("parallel",),
            vmem_limit_bytes=_VMEM_LIMIT_BYTES,
        ),
    )(x_view, w_mat, b_smem)

    # Free reshape back to the PyTorch (B, 1) column convention.
    return out.reshape(B, 1)


if __name__ == "__main__":
    # Small shapes consistent with the module: batch=8, n_feature=32
    B, F = 8, 32
    key = jax.random.PRNGKey(0)
    kx, kw, kb = jax.random.split(key, 3)

    x = jax.random.normal(kx, (B, F), dtype=jnp.float32)

    # Deterministic parameter init mimicking nn.Linear's uniform(-1/sqrt(F), 1/sqrt(F))
    bound = 1.0 / (F ** 0.5)
    weight = jax.random.uniform(kw, (1, F), minval=-bound, maxval=bound,
                                dtype=jnp.float32)
    bias = jax.random.uniform(kb, (1,), minval=-bound, maxval=bound,
                              dtype=jnp.float32)

    y = jax.jit(liner_net_forward)(x, weight, bias)
    jax.block_until_ready(y)

    # Reference check in plain JAX (same math as PyTorch Linear).
    y_ref = x @ weight.T + bias
    assert y.shape == (B, 1)
    # Tolerance allows for MXU multi-pass f32 rounding differences vs. XLA.
    assert jnp.allclose(y, y_ref, atol=1e-4, rtol=1e-4), \
        float(jnp.max(jnp.abs(y - y_ref)))

    print("KERNEL_OK")
</pallas_src>

<mosaic_0001>
module attributes {stable_mosaic.version = 11 : i64} {
  func.func @_linear_kernel(%arg0: i32, %arg1: memref<2x128xf32, #tpu.memory_space<vmem>>, %arg2: memref<128x4xf32, #tpu.memory_space<vmem>>, %arg3: memref<1xf32, #tpu.memory_space<smem>>, %arg4: memref<2x4xf32, #tpu.memory_space<vmem>>) attributes {dimension_semantics = [#tpu.dimension_semantics<parallel>], iteration_bounds = array<i64: 1>, scalar_prefetch = 0 : i64, scratch_operands = 0 : i64, tpu.core_type = #tpu.core_type<tc>, window_params = [{transform_indices = @transform_0, window_bounds = array<i64: 2, 128>}, {pipeline_mode = #tpu.pipeline_mode<synchronous>, transform_indices = @transform_1, window_bounds = array<i64: 128, 4>}, {transform_indices = @transform_2, window_bounds = array<i64: 1>}, {transform_indices = @transform_3, window_bounds = array<i64: 2, 4>}]} {
    %c0 = arith.constant 0 : index
    %c0_0 = arith.constant 0 : index
    %0 = vector.load %arg1[%c0, %c0_0] : memref<2x128xf32, #tpu.memory_space<vmem>>, vector<2x128xf32>
    %c0_1 = arith.constant 0 : index
    %c0_2 = arith.constant 0 : index
    %1 = vector.load %arg2[%c0_1, %c0_2] : memref<128x4xf32, #tpu.memory_space<vmem>>, vector<128x4xf32>
    %cst = arith.constant dense<0.000000e+00> : vector<2x4xf32>
    %2 = tpu.matmul %0, %1, %cst {dimension_numbers = #tpu.dot_dimension_numbers<[1], [0], [0], [1], [0, 0, 1, 1], [], []>} : vector<2x128xf32>, vector<128x4xf32>, vector<2x4xf32> -> vector<2x4xf32>
    %c0_3 = arith.constant 0 : index
    %3 = memref.load %arg3[%c0_3] : memref<1xf32, #tpu.memory_space<smem>>
    %4 = vector.broadcast %3 : f32 to vector<2x4xf32>
    %5 = arith.addf %2, %4 : vector<2x4xf32>
    %c0_4 = arith.constant 0 : index
    %c0_5 = arith.constant 0 : index
    %6 = vector.load %arg4[%c0_4, %c0_5] : memref<2x4xf32, #tpu.memory_space<vmem>>, vector<2x4xf32>
    tpu.vector_store %arg4[%c0_4, %c0_5], %5 {strides = array<i32>} : memref<2x4xf32, #tpu.memory_space<vmem>>, vector<2x4xf32>,
    return
  }
  func.func @transform_0(%arg0: i32) -> (i32, i32) {
    %c0_i32 = arith.constant 0 : i32
    %c0_i32_0 = arith.constant 0 : i32
    return %arg0, %c0_i32 : i32, i32
  }
  func.func @transform_1(%arg0: i32) -> (i32, i32) {
    %c0_i32 = arith.constant 0 : i32
    %c0_i32_0 = arith.constant 0 : i32
    %c0_i32_1 = arith.constant 0 : i32
    return %c0_i32, %c0_i32_0 : i32, i32
  }
  func.func @transform_2(%arg0: i32) -> i32 {
    %c0_i32 = arith.constant 0 : i32
    %c0_i32_0 = arith.constant 0 : i32
    return %c0_i32 : i32
  }
  func.func @transform_3(%arg0: i32) -> (i32, i32) {
    %c0_i32 = arith.constant 0 : i32
    %c0_i32_0 = arith.constant 0 : i32
    return %arg0, %c0_i32 : i32, i32
  }
}

</mosaic_0001>

<llo_original>
// kernel: liner_net_forward.1
$region0: #{liner_net_forward.1}
  #allocation0 [shape = 'u32[]', space=smem, size = 0x4, offset = 0x4, fixed_abs, tag = 'smem constant byte address 0x4 - core index']
  #allocation1 [shape = 'u32[144,128]{1,0:T(1,128)}', space=vmem, size = 0x12000, scoped, tag = 'internal scratch']
  #allocation2 [shape = 'f32[1]{0:T(128)S(6)}', space=smem, size = 0x200, scoped, tag = 'scoped memory for liner_net_forward.1']
  %s0 = inlined_call_operand.vmem [shape: f32[2,128], index: 0, kind: input, shape index: {}]
  %s1 = inlined_call_operand.vmem [shape: f32[128,4], index: 1, kind: input, shape index: {}]
  %s2 = inlined_call_operand.<no memory space> [shape: f32[1], index: 2, kind: input, shape index: {}]
  %s3 = inlined_call_operand.vmem [shape: f32[2,4], index: 3, kind: output, shape index: {}]
  %s4 = sld [smem:[#allocation0]]
  $region22: #{liner_net_forward.1} parent=0
    _
  %s6 = ssub.s32 1, %s4
  %s7 = scalar_select 0, %s6, %s4
  %8 = sst [smem:[#allocation2]] %s2
  // Predicated region
  $region2: #{liner_net_forward.1} parent=0 // pred_check
    _
  $region3: #{liner_net_forward.1} parent=0 // pred_check_branch
    %10 = sbr.rel (0) target = $region5
  $region4: #{liner_net_forward.1} parent=0 // pred_region
    _
  $region5: #{liner_net_forward.1} parent=0 // pred_fallthru
    _
  // Predicated region
  $region6: #{liner_net_forward.1} parent=0 // pred_check
    _
  $region7: #{liner_net_forward.1} parent=0 // pred_check_branch
    %12 = sbr.rel (0) target = $region9
  $region8: #{liner_net_forward.1} parent=0 // pred_region
    _
  $region9: #{liner_net_forward.1} parent=0 // pred_fallthru
    _
  // Predicated region
  $region10: #{liner_net_forward.1} parent=0 // pred_check
    _
  $region11: #{liner_net_forward.1} parent=0 // pred_check_branch
    %14 = sbr.rel (0) target = $region13
  $region12: #{liner_net_forward.1} parent=0 // pred_region
    _
  $region13: #{liner_net_forward.1} parent=0 // pred_fallthru
    _
  %v15 = vld [vmem:[%s0] sm:$0x3]
  %v16 = vld [vmem:[%s1] sm:$0xff]
  %v17 = vld [vmem:[%s1 + $0x8] sm:$0xff]
  %v18 = vld [vmem:[%s1 + $0x10] sm:$0xff]
  %v19 = vld [vmem:[%s1 + $0x18] sm:$0xff]
  %v20 = vld [vmem:[%s1 + $0x20] sm:$0xff]
  %v21 = vld [vmem:[%s1 + $0x28] sm:$0xff]
  %v22 = vld [vmem:[%s1 + $0x30] sm:$0xff]
  %v23 = vld [vmem:[%s1 + $0x38] sm:$0xff]
  %v24 = vld [vmem:[%s1 + $0x40] sm:$0xff]
  %v25 = vld [vmem:[%s1 + $0x48] sm:$0xff]
  %v26 = vld [vmem:[%s1 + $0x50] sm:$0xff]
  %v27 = vld [vmem:[%s1 + $0x58] sm:$0xff]
  %v28 = vld [vmem:[%s1 + $0x60] sm:$0xff]
  %v29 = vld [vmem:[%s1 + $0x68] sm:$0xff]
  %v30 = vld [vmem:[%s1 + $0x70] sm:$0xff]
  %v31 = vld [vmem:[%s1 + $0x78] sm:$0xff]
  %s32 = sld [smem:[#allocation2]]
  %v33 = vstv %s32
  %34 = vmatprep.subr.mxu0 0.0
  %35 = vmatpush1.msra.mxu0 %v31
  %36 = vmatprep.subr.mxu0 0.0
  %37 = vmatpush1.msra.mxu0 %v30
  %38 = vmatprep.subr.mxu0 0.0
  %39 = vmatpush1.msra.mxu0 %v29
  %40 = vmatprep.subr.mxu0 0.0
  %41 = vmatpush1.msra.mxu0 %v28
  %42 = vmatprep.subr.mxu0 0.0
  %43 = vmatpush1.msra.mxu0 %v27
  %44 = vmatprep.subr.mxu0 0.0
  %45 = vmatpush1.msra.mxu0 %v26
  %46 = vmatprep.subr.mxu0 0.0
  %47 = vmatpush1.msra.mxu0 %v25
  %48 = vmatprep.subr.mxu0 0.0
  %49 = vmatpush1.msra.mxu0 %v24
  %50 = vmatprep.subr.mxu0 0.0
  %51 = vmatpush1.msra.mxu0 %v23
  %52 = vmatprep.subr.mxu0 0.0
  %53 = vmatpush1.msra.mxu0 %v22
  %54 = vmatprep.subr.mxu0 0.0
  %55 = vmatpush1.msra.mxu0 %v21
  %56 = vmatprep.subr.mxu0 0.0
  %57 = vmatpush1.msra.mxu0 %v20
  %58 = vmatprep.subr.mxu0 0.0
  %59 = vmatpush1.msra.mxu0 %v19
  %60 = vmatprep.subr.mxu0 0.0
  %61 = vmatpush1.msra.mxu0 %v18
  %62 = vmatprep.subr.mxu0 0.0
  %63 = vmatpush1.msra.mxu0 %v17
  %64 = vmatprep.subr.mxu0 0.0
  %65 = vmatpush1.msra.mxu0 %v16
  %66 = vmatprep.subr.mxu0 0.0
  %67 = vmatpush2.msra.mxu0 0.0
  %68 = vmatprep.subr.mxu0 0.0
  %69 = vmatpush2.msra.mxu0 0.0
  %70 = vmatprep.subr.mxu0 0.0
  %71 = vmatpush2.msra.mxu0 0.0
  %72 = vmatprep.subr.mxu0 0.0
  %73 = vmatpush2.msra.mxu0 0.0
  %74 = vmatprep.subr.mxu0 0.0
  %75 = vmatpush2.msra.mxu0 0.0
  %76 = vmatprep.subr.mxu0 0.0
  %77 = vmatpush2.msra.mxu0 0.0
  %78 = vmatprep.subr.mxu0 0.0
  %79 = vmatpush2.msra.mxu0 0.0
  %80 = vmatprep.subr.mxu0 0.0
  %81 = vmatpush2.msra.mxu0 0.0
  %82 = vmatprep.subr.mxu0 0.0
  %83 = vmatpush2.msra.mxu0 0.0
  %84 = vmatprep.subr.mxu0 0.0
  %85 = vmatpush2.msra.mxu0 0.0
  %86 = vmatprep.subr.mxu0 0.0
  %87 = vmatpush2.msra.mxu0 0.0
  %88 = vmatprep.subr.mxu0 0.0
  %89 = vmatpush2.msra.mxu0 0.0
  %90 = vmatprep.subr.mxu0 0.0
  %91 = vmatpush2.msra.mxu0 0.0
  %92 = vmatprep.subr.mxu0 0.0
  %93 = vmatpush2.msra.mxu0 0.0
  %94 = vmatprep.subr.mxu0 0.0
  %95 = vmatpush2.msra.mxu0 0.0
  %96 = vmatprep.subr.mxu0 0.0
  %97 = vmatpush2.msra.mxu0 0.0
  %98 = vmatprep.mubr.f32.mxu0 0.0
  %99 = vmatmul.mubr.f32.gmra.mxu0 %v15
  %v100 = vpop.f32.mrf.mxu0
  %v101 = vadd.f32 %v33, %v100
  %v102 = vpop.f32.mrf.mxu0
  %103 = vdwg.mxu0
  %vm104 = vcmask 25600
  %105 = vst.msk [vmem:[%s3] sm:$0x3] %vm104, %v101
  // Predicated region
  $region14: #{liner_net_forward.1} parent=0 // pred_check
    _
  $region15: #{liner_net_forward.1} parent=0 // pred_check_branch
    %107 = sbr.rel (0) target = $region17
  $region16: #{liner_net_forward.1} parent=0 // pred_region
    _
  $region17: #{liner_net_forward.1} parent=0 // pred_fallthru
    _
  // Predicated region
  $region18: #{liner_net_forward.1} parent=0 // pred_check
    _
  $region19: #{liner_net_forward.1} parent=0 // pred_check_branch
    %109 = sbr.rel (0) target = $region21
  $region20: #{liner_net_forward.1} parent=0 // pred_region
    _
  $region21: #{liner_net_forward.1} parent=0 // pred_fallthru
    _

</llo_original>
